<compile_context>
chip_gen: v7x
topology: tpu7x:2x2x1
jax: 0.10.0
libtpu: 0.0.40
codegen_flags: <defaults>
</compile_context>

<pallas_src>
import jax
import jax.numpy as jnp
from jax.experimental import pallas as pl
from jax.experimental.pallas import tpu as pltpu


def fused_mlp_kernel(x_ref, w1_ref, b1_ref, w2_ref, b2_ref, o_ref):
    # Cast the streamed batch tile to the MXU compute dtype in VMEM.
    x = x_ref[...].astype(w1_ref.dtype)
    # Layer 1 fused over all columns:  (tb, in) @ (in, C*H1) -> (tb, C*H1)
    h = jnp.dot(x, w1_ref[...], preferred_element_type=jnp.float32)
    h = jnp.maximum(h + b1_ref[...], 0.0)                      # f32 bias + ReLU
    # Layer 2 as a single block-diagonal matmul: (tb, C*H1) @ (C*H1, C*H2)
    y = jnp.dot(h.astype(w2_ref.dtype), w2_ref[...],
                preferred_element_type=jnp.float32)
    y = jnp.maximum(y + b2_ref[...], 0.0)                      # last_activation == 'relu'
    o_ref[...] = y.astype(o_ref.dtype)                         # torch.cat(dim=1) layout


def _round_up(v, m):
    return ((v + m - 1) // m) * m


def multi_column_mlp(x, w1, b1, w2, b2, *, compute_dtype=jnp.bfloat16,
                     block_b=None):
    """x: [B, in]; w1: [C, in, H1]; b1: [C, 1, H1]; w2: [C, H1, H2]; b2: [C, 1, H2].

    Returns [B, C*H2] == torch.cat([mlp_c(x) for c in columns], dim=1).
    """
    B, in_size = x.shape
    C, _, H1 = w1.shape
    H2 = w2.shape[-1]

    cd = x.dtype if compute_dtype is None else compute_dtype

    # ---- one-time weight re-layout (would normally happen at weight-load time) ----
    # Layer 1 fused across columns: W1_cat[:, c*H1:(c+1)*H1] = W1[c]
    w1_cat = jnp.transpose(w1, (1, 0, 2)).reshape(in_size, C * H1).astype(cd)
    b1_cat = b1.reshape(1, C * H1).astype(jnp.float32)
    # Layer 2 block-diagonal: W2_bd[c*H1+i, d*H2+j] = W2[c, i, j] * (c == d)
    eye_c = jnp.eye(C, dtype=w2.dtype)
    w2_bd = (w2[:, :, None, :] * eye_c[:, None, :, None]).reshape(
        C * H1, C * H2).astype(cd)
    b2_cat = b2.reshape(1, C * H2).astype(jnp.float32)

    # ---- batch tiling (weights/biases stay resident across batch tiles) ----
    if block_b is None:
        block_b = min(512, _round_up(B, 8))
    block_b = max(8, min(block_b, _round_up(B, 8)))
    block_b = _round_up(block_b, 8)
    Bp = _round_up(B, block_b)
    x_in = x if Bp == B else jnp.pad(x, ((0, Bp - B), (0, 0)))
    grid = (Bp // block_b,)

    flops = 2 * Bp * in_size * C * H1 + 2 * Bp * (C * H1) * (C * H2)
    bytes_accessed = (x_in.size * x_in.dtype.itemsize
                      + w1_cat.size * w1_cat.dtype.itemsize
                      + w2_bd.size * w2_bd.dtype.itemsize
                      + (b1_cat.size + b2_cat.size) * 4
                      + Bp * C * H2 * jnp.dtype(x.dtype).itemsize)

    out = pl.pallas_call(
        fused_mlp_kernel,
        out_shape=jax.ShapeDtypeStruct((Bp, C * H2), x.dtype),
        grid_spec=pltpu.PrefetchScalarGridSpec(
            num_scalar_prefetch=0,
            grid=grid,
            in_specs=[
                pl.BlockSpec((block_b, in_size), lambda i: (i, 0)),    # x tile streams
                pl.BlockSpec((in_size, C * H1), lambda i: (0, 0)),     # weights resident
                pl.BlockSpec((1, C * H1), lambda i: (0, 0)),
                pl.BlockSpec((C * H1, C * H2), lambda i: (0, 0)),
                pl.BlockSpec((1, C * H2), lambda i: (0, 0)),
            ],
            out_specs=pl.BlockSpec((block_b, C * H2), lambda i: (i, 0)),
        ),
        compiler_params=pltpu.CompilerParams(
            dimension_semantics=("parallel",)),  # batch tiles are independent
        cost_estimate=pl.CostEstimate(
            flops=flops, transcendentals=0, bytes_accessed=bytes_accessed),
    )(x_in, w1_cat, b1_cat, w2_bd, b2_cat)

    return out if Bp == B else out[:B]


if __name__ == "__main__":
    # Small shapes consistent with the module:
    # in_size=16, hidden_sizes=[32, 64], num_columns=3, batch=8.
    B, IN, H1, H2, C = 8, 16, 32, 64, 3

    key = jax.random.PRNGKey(0)
    kx, kw1, kb1, kw2, kb2 = jax.random.split(key, 5)

    x = jax.random.normal(kx, (B, IN), jnp.float32)
    # Deterministic nn.Linear-style init (uniform +/- 1/sqrt(fan_in)).
    s1 = 1.0 / (IN ** 0.5)
    s2 = 1.0 / (H1 ** 0.5)
    w1 = jax.random.uniform(kw1, (C, IN, H1), jnp.float32, -s1, s1)
    b1 = jax.random.uniform(kb1, (C, 1, H1), jnp.float32, -s1, s1)
    w2 = jax.random.uniform(kw2, (C, H1, H2), jnp.float32, -s2, s2)
    b2 = jax.random.uniform(kb2, (C, 1, H2), jnp.float32, -s2, s2)

    out = jax.block_until_ready(
        multi_column_mlp(x, w1, b1, w2, b2, compute_dtype=jnp.bfloat16))

    # Reference 1: plain-JAX, same bf16-in / f32-accumulate recipe as the kernel.
    cols_bf16 = []
    for c in range(C):
        h = jnp.dot(x.astype(jnp.bfloat16), w1[c].astype(jnp.bfloat16),
                    preferred_element_type=jnp.float32)
        h = jnp.maximum(h + b1[c], 0.0)
        y = jnp.dot(h.astype(jnp.bfloat16), w2[c].astype(jnp.bfloat16),
                    preferred_element_type=jnp.float32)
        y = jnp.maximum(y + b2[c], 0.0)
        cols_bf16.append(y.astype(x.dtype))
    ref_bf16 = jnp.concatenate(cols_bf16, axis=1)

    # Reference 2: full-f32 module semantics (loose check for the bf16 path).
    cols_f32 = []
    for c in range(C):
        h = jnp.maximum(x @ w1[c] + b1[c], 0.0)
        y = jnp.maximum(h @ w2[c] + b2[c], 0.0)
        cols_f32.append(y)
    ref_f32 = jnp.concatenate(cols_f32, axis=1)

    assert out.shape == (B, C * H2), out.shape
    assert jnp.allclose(out, ref_bf16, atol=2e-3, rtol=2e-3), "mismatch vs bf16 reference"
    assert jnp.allclose(out, ref_f32, atol=5e-2, rtol=5e-2), "mismatch vs f32 reference"
    print("KERNEL_OK")
</pallas_src>

<mosaic_0001>
module attributes {stable_mosaic.version = 11 : i64} {
  func.func @fused_mlp_kernel(%arg0: i32, %arg1: memref<8x16xf32, #tpu.memory_space<vmem>>, %arg2: memref<16x96xbf16, #tpu.memory_space<vmem>>, %arg3: memref<1x96xf32, #tpu.memory_space<vmem>>, %arg4: memref<96x192xbf16, #tpu.memory_space<vmem>>, %arg5: memref<1x192xf32, #tpu.memory_space<vmem>>, %arg6: memref<8x192xf32, #tpu.memory_space<vmem>>) attributes {dimension_semantics = [#tpu.dimension_semantics<parallel>], iteration_bounds = array<i64: 1>, scalar_prefetch = 0 : i64, scratch_operands = 0 : i64, tpu.core_type = #tpu.core_type<tc>, window_params = [{transform_indices = @transform_0, window_bounds = array<i64: 8, 16>}, {pipeline_mode = #tpu.pipeline_mode<synchronous>, transform_indices = @transform_1, window_bounds = array<i64: 16, 96>}, {pipeline_mode = #tpu.pipeline_mode<synchronous>, transform_indices = @transform_2, window_bounds = array<i64: 1, 96>}, {pipeline_mode = #tpu.pipeline_mode<synchronous>, transform_indices = @transform_3, window_bounds = array<i64: 96, 192>}, {pipeline_mode = #tpu.pipeline_mode<synchronous>, transform_indices = @transform_4, window_bounds = array<i64: 1, 192>}, {transform_indices = @transform_5, window_bounds = array<i64: 8, 192>}]} {
    %c0 = arith.constant 0 : index
    %c0_0 = arith.constant 0 : index
    %0 = vector.load %arg1[%c0, %c0_0] : memref<8x16xf32, #tpu.memory_space<vmem>>, vector<8x16xf32>
    %1 = arith.truncf %0 : vector<8x16xf32> to vector<8x16xbf16>
    %c0_1 = arith.constant 0 : index
    %c0_2 = arith.constant 0 : index
    %2 = vector.load %arg2[%c0_1, %c0_2] : memref<16x96xbf16, #tpu.memory_space<vmem>>, vector<16x96xbf16>
    %cst = arith.constant dense<0.000000e+00> : vector<8x96xf32>
    %3 = tpu.matmul %1, %2, %cst {dimension_numbers = #tpu.dot_dimension_numbers<[1], [0], [0], [1], [0, 0, 1, 1], [], []>} : vector<8x16xbf16>, vector<16x96xbf16>, vector<8x96xf32> -> vector<8x96xf32>
    %c0_3 = arith.constant 0 : index
    %c0_4 = arith.constant 0 : index
    %4 = vector.load %arg3[%c0_3, %c0_4] : memref<1x96xf32, #tpu.memory_space<vmem>>, vector<1x96xf32>
    %5 = vector.broadcast %4 : vector<1x96xf32> to vector<8x96xf32>
    %6 = arith.addf %3, %5 : vector<8x96xf32>
    %cst_5 = arith.constant 0.000000e+00 : f32
    %7 = vector.broadcast %cst_5 : f32 to vector<8x96xf32>
    %8 = arith.maximumf %6, %7 : vector<8x96xf32>
    %9 = arith.truncf %8 : vector<8x96xf32> to vector<8x96xbf16>
    %c0_6 = arith.constant 0 : index
    %c0_7 = arith.constant 0 : index
    %10 = vector.load %arg4[%c0_6, %c0_7] : memref<96x192xbf16, #tpu.memory_space<vmem>>, vector<96x192xbf16>
    %cst_8 = arith.constant dense<0.000000e+00> : vector<8x192xf32>
    %11 = tpu.matmul %9, %10, %cst_8 {dimension_numbers = #tpu.dot_dimension_numbers<[1], [0], [0], [1], [0, 0, 1, 1], [], []>} : vector<8x96xbf16>, vector<96x192xbf16>, vector<8x192xf32> -> vector<8x192xf32>
    %c0_9 = arith.constant 0 : index
    %c0_10 = arith.constant 0 : index
    %12 = vector.load %arg5[%c0_9, %c0_10] : memref<1x192xf32, #tpu.memory_space<vmem>>, vector<1x192xf32>
    %13 = vector.broadcast %12 : vector<1x192xf32> to vector<8x192xf32>
    %14 = arith.addf %11, %13 : vector<8x192xf32>
    %cst_11 = arith.constant 0.000000e+00 : f32
    %15 = vector.broadcast %cst_11 : f32 to vector<8x192xf32>
    %16 = arith.maximumf %14, %15 : vector<8x192xf32>
    %c0_12 = arith.constant 0 : index
    %c0_13 = arith.constant 0 : index
    %17 = vector.load %arg6[%c0_12, %c0_13] : memref<8x192xf32, #tpu.memory_space<vmem>>, vector<8x192xf32>
    tpu.vector_store %arg6[%c0_12, %c0_13], %16 {strides = array<i32>} : memref<8x192xf32, #tpu.memory_space<vmem>>, vector<8x192xf32>,
    return
  }
  func.func @transform_0(%arg0: i32) -> (i32, i32) {
    %c0_i32 = arith.constant 0 : i32
    %c0_i32_0 = arith.constant 0 : i32
    return %arg0, %c0_i32 : i32, i32
  }
  func.func @transform_1(%arg0: i32) -> (i32, i32) {
    %c0_i32 = arith.constant 0 : i32
    %c0_i32_0 = arith.constant 0 : i32
    %c0_i32_1 = arith.constant 0 : i32
    return %c0_i32, %c0_i32_0 : i32, i32
  }
  func.func @transform_2(%arg0: i32) -> (i32, i32) {
    %c0_i32 = arith.constant 0 : i32
    %c0_i32_0 = arith.constant 0 : i32
    %c0_i32_1 = arith.constant 0 : i32
    return %c0_i32, %c0_i32_0 : i32, i32
  }
  func.func @transform_3(%arg0: i32) -> (i32, i32) {
    %c0_i32 = arith.constant 0 : i32
    %c0_i32_0 = arith.constant 0 : i32
    %c0_i32_1 = arith.constant 0 : i32
    return %c0_i32, %c0_i32_0 : i32, i32
  }
  func.func @transform_4(%arg0: i32) -> (i32, i32) {
    %c0_i32 = arith.constant 0 : i32
    %c0_i32_0 = arith.constant 0 : i32
    %c0_i32_1 = arith.constant 0 : i32
    return %c0_i32, %c0_i32_0 : i32, i32
  }
  func.func @transform_5(%arg0: i32) -> (i32, i32) {
    %c0_i32 = arith.constant 0 : i32
    %c0_i32_0 = arith.constant 0 : i32
    return %arg0, %c0_i32 : i32, i32
  }
}

</mosaic_0001>

<llo_original>
// kernel: tpu_custom_call.1
$region0: #{tpu_custom_call.1}
  #allocation0 [shape = 'u32[]', space=smem, size = 0x4, offset = 0x4, fixed_abs, tag = 'smem constant byte address 0x4 - core index']
  #allocation1 [shape = 'u32[144,128]{1,0:T(1,128)}', space=vmem, size = 0x12000, scoped, tag = 'internal scratch']
  %s0 = inlined_call_operand.hbm [shape: f32[8,16], index: 0, kind: input, shape index: {}]
  %s1 = inlined_call_operand.hbm [shape: bf16[16,96], index: 1, kind: input, shape index: {}]
  %s2 = inlined_call_operand.vmem [shape: f32[1,96], index: 2, kind: input, shape index: {}]
  %s3 = inlined_call_operand.hbm [shape: bf16[96,192], index: 3, kind: input, shape index: {}]
  %s4 = inlined_call_operand.vmem [shape: f32[1,192], index: 4, kind: input, shape index: {}]
  %s5 = inlined_call_operand.hbm [shape: f32[8,192], index: 5, kind: output, shape index: {}]
  %s6 = sld [smem:[#allocation0]]
  $region42: #{tpu_custom_call.1} parent=0
    _
  %s8 = ssub.s32 1, %s6
  %s9 = scalar_select 0, %s8, %s6
  $region1: #{tpu_custom_call.1} parent=0
    #allocation2 [shape = 'u8[4096]{0}', space=vmem, size = 0x1000, scoped, tag = 'input window, operand 0, single buffered']
    #allocation3 [shape = 's32[1]{0}', space=sflag, size = 0x4, scoped, tag = 'scoped memory for tpu_custom_call.1']
    #allocation4 [shape = 's32[1]{0}', space=sflag, size = 0x4, scoped, tag = 'scoped memory for tpu_custom_call.1']
    #allocation5 [shape = 'u8[4096]{0}', space=vmem, size = 0x1000, scoped, tag = 'input window, operand 1, single buffered']
    #allocation6 [shape = 's32[1]{0}', space=sflag, size = 0x4, scoped, tag = 'scoped memory for tpu_custom_call.1']
    #allocation7 [shape = 'u8[49152]{0}', space=vmem, size = 0xc000, scoped, tag = 'input window, operand 3, single buffered']
    #allocation8 [shape = 'u8[8192]{0}', space=vmem, size = 0x2000, scoped, tag = 'output window, operand 0, single buffered']
    %10 = vsyncpa [#allocation3], 0
    %11 = vsyncpa [#allocation6], 0
    %12 = vsyncpa [#allocation4], 0
    // Predicated region
    $region2: #{tpu_custom_call.1} parent=1 // pred_check
      _
    $region3: #{tpu_custom_call.1} parent=1 // pred_check_branch
      %14 = sbr.rel (0) target = $region5
    $region4: #{tpu_custom_call.1} parent=1 // pred_region
      %s16 = ssub.s32 128, 128
      %17 = vsyncadd [#allocation3], %s16
      %s19 = sshll.u32 [#allocation2], 4
      %s20 = int_to_ptr.vmem [resolvable:$true] %s19
      %22 = dma.hbm_to_vmem [thread:$0]  %s0, 128, %s20, [#allocation3]
    $region5: #{tpu_custom_call.1} parent=1 // pred_fallthru
      _
    // Predicated region
    $region6: #{tpu_custom_call.1} parent=1 // pred_check
      _
    $region7: #{tpu_custom_call.1} parent=1 // pred_check_branch
      %24 = sbr.rel (0) target = $region9
    $region8: #{tpu_custom_call.1} parent=1 // pred_region
      %s26 = ssub.s32 128, 128
      %27 = vsyncadd [#allocation6], %s26
      %s28 = sshll.u32 [#allocation5], 4
      %s29 = int_to_ptr.vmem [resolvable:$true] %s28
      %34 = dma.hbm_to_vmem [thread:$0]  %s1, 128, %s29, [#allocation6], 64, 64, 4
    $region9: #{tpu_custom_call.1} parent=1 // pred_fallthru
      _
    // Predicated region
    $region10: #{tpu_custom_call.1} parent=1 // pred_check
      _
    $region11: #{tpu_custom_call.1} parent=1 // pred_check_branch
      %36 = sbr.rel (0) target = $region13
    $region12: #{tpu_custom_call.1} parent=1 // pred_region
      _
    $region13: #{tpu_custom_call.1} parent=1 // pred_fallthru
      _
    // Predicated region
    $region14: #{tpu_custom_call.1} parent=1 // pred_check
      _
    $region15: #{tpu_custom_call.1} parent=1 // pred_check_branch
      %38 = sbr.rel (0) target = $region17
    $region16: #{tpu_custom_call.1} parent=1 // pred_region
      %s40 = ssub.s32 1536, 1536
      %41 = vsyncadd [#allocation6], %s40
      %s42 = sshll.u32 [#allocation7], 4
      %s43 = int_to_ptr.vmem [resolvable:$true] %s42
      %48 = dma.hbm_to_vmem [thread:$0]  %s3, 1536, %s43, [#allocation6], 128, 128, 8
    $region17: #{tpu_custom_call.1} parent=1 // pred_fallthru
      _
    // Predicated region
    $region18: #{tpu_custom_call.1} parent=1 // pred_check
      _
    $region19: #{tpu_custom_call.1} parent=1 // pred_check_branch
      %50 = sbr.rel (0) target = $region21
    $region20: #{tpu_custom_call.1} parent=1 // pred_region
      _
    $region21: #{tpu_custom_call.1} parent=1 // pred_fallthru
      _
    // Predicated region
    $region22: #{tpu_custom_call.1} parent=1 // pred_check
      _
    $region23: #{tpu_custom_call.1} parent=1 // pred_check_branch
      %52 = sbr.rel (0) target = $region25
    $region24: #{tpu_custom_call.1} parent=1 // pred_region
      %53 = dma.done [#allocation3], 128
    $region25: #{tpu_custom_call.1} parent=1 // pred_fallthru
      _
    // Predicated region
    $region26: #{tpu_custom_call.1} parent=1 // pred_check
      _
    $region27: #{tpu_custom_call.1} parent=1 // pred_check_branch
      %55 = sbr.rel (0) target = $region29
    $region28: #{tpu_custom_call.1} parent=1 // pred_region
      %56 = dma.done [#allocation6], 128
    $region29: #{tpu_custom_call.1} parent=1 // pred_fallthru
      _
    // Predicated region
    $region30: #{tpu_custom_call.1} parent=1 // pred_check
      _
    $region31: #{tpu_custom_call.1} parent=1 // pred_check_branch
      %58 = sbr.rel (0) target = $region33
    $region32: #{tpu_custom_call.1} parent=1 // pred_region
      %59 = dma.done [#allocation6], 1536
    $region33: #{tpu_custom_call.1} parent=1 // pred_fallthru
      _
    %v61 = vld [vmem:[#allocation2] sm:$0xff]
    %v62 = vpack.c.bf16 %v61, %v61
    %v63 = vld [vmem:[#allocation5] sm:$0xf]
    %v64 = vld [vmem:[#allocation5 + $0x4] sm:$0xf]
    %v65 = vld [vmem:[%s2] sm:$0x1]
    %v67 = vlaneseq
    %v68 = vshrl.u32 %v67, 7
    %v69 = vsub.s32 0, %v68
    %v70 = vrot.slane %v65, %v69
    %v74 = vunpack.c.l.b16 %v63
    %v75 = vunpack.c.l.b16 %v64
    %v76 = vpack.c.b16 %v75, %v74
    %vm78 = vcmask 130048
    %v80 = vsel %vm78, %v62, 0
    %82 = vmatprep.subr.bf16.mxu0 0
    %83 = vmatpush1.bf16.msra.mxu0 %v76
    %84 = vmatprep.subr.bf16.mxu0 0
    %85 = vmatpush1.bf16.msra.mxu0 0
    %86 = vmatprep.subr.bf16.mxu0 0
    %87 = vmatpush1.bf16.msra.mxu0 0
    %88 = vmatprep.subr.bf16.mxu0 0
    %89 = vmatpush1.bf16.msra.mxu0 0
    %90 = vmatprep.subr.bf16.mxu0 0
    %91 = vmatpush1.bf16.msra.mxu0 0
    %92 = vmatprep.subr.bf16.mxu0 0
    %93 = vmatpush1.bf16.msra.mxu0 0
    %94 = vmatprep.subr.bf16.mxu0 0
    %95 = vmatpush1.bf16.msra.mxu0 0
    %96 = vmatprep.subr.bf16.mxu0 0
    %97 = vmatpush1.bf16.msra.mxu0 0
    %98 = vmatprep.subr.bf16.mxu0 0
    %99 = vmatpush1.bf16.msra.mxu0 0
    %100 = vmatprep.subr.bf16.mxu0 0
    %101 = vmatpush1.bf16.msra.mxu0 0
    %102 = vmatprep.subr.bf16.mxu0 0
    %103 = vmatpush1.bf16.msra.mxu0 0
    %104 = vmatprep.subr.bf16.mxu0 0
    %105 = vmatpush1.bf16.msra.mxu0 0
    %106 = vmatprep.subr.bf16.mxu0 0
    %107 = vmatpush1.bf16.msra.mxu0 0
    %108 = vmatprep.subr.bf16.mxu0 0
    %109 = vmatpush1.bf16.msra.mxu0 0
    %110 = vmatprep.subr.bf16.mxu0 0
    %111 = vmatpush1.bf16.msra.mxu0 0
    %112 = vmatprep.subr.bf16.mxu0 0
    %113 = vmatpush1.bf16.msra.mxu0 0
    %114 = vmatprep.mubr.bf16.mxu0 0
    %115 = vmatmul.mubr.bf16.gmra.mrb[0].mxu0 %v80
    %v116 = vpop.f32.mrb[0].mxu0
    %v117 = vadd.f32 %v70, %v116
    %v118 = vpop.f32.mrb[0].mxu0
    %v119 = vpop.f32.mrb[0].mxu0
    %v120 = vpop.f32.mrb[0].mxu0
    %121 = vdwg.mxu0
    %v122 = vmax.f32 %v117, 0.0
    %v123 = vpack.c.bf16 %v122, %v122
    %v124 = vld [vmem:[#allocation7] sm:$0xff]
    %v125 = vld [vmem:[#allocation7 + $0x8] sm:$0xff]
    %v126 = vld [vmem:[#allocation7 + $0x10] sm:$0xff]
    %v127 = vld [vmem:[#allocation7 + $0x18] sm:$0xff]
    %v128 = vld [vmem:[#allocation7 + $0x20] sm:$0xff]
    %v129 = vld [vmem:[#allocation7 + $0x28] sm:$0xff]
    %v130 = vld [vmem:[#allocation7 + $0x30] sm:$0xff]
    %v131 = vld [vmem:[#allocation7 + $0x38] sm:$0xff]
    %v132 = vld [vmem:[#allocation7 + $0x40] sm:$0xff]
    %v133 = vld [vmem:[#allocation7 + $0x48] sm:$0xff]
    %v134 = vld [vmem:[#allocation7 + $0x50] sm:$0xff]
    %v135 = vld [vmem:[#allocation7 + $0x58] sm:$0xff]
    %v136 = vld [vmem:[%s4] sm:$0x3]
    %v138 = vlaneseq
    %v139 = vshrl.u32 %v138, 7
    %v140 = vsub.s32 0, %v139
    %v141 = vrot.slane %v136, %v140
    %v142 = vlaneseq
    %v143 = vshrl.u32 %v142, 7
    %v144 = vsub.s32 1, %v143
    %v145 = vrot.slane %v136, %v144
    %v160 = vunpack.c.l.b16 %v124
    %v161 = vunpack.c.h.b16 %v124
    %v162 = vunpack.c.l.b16 %v125
    %v163 = vunpack.c.h.b16 %v125
    %v164 = vunpack.c.l.b16 %v126
    %v165 = vunpack.c.h.b16 %v126
    %v166 = vunpack.c.l.b16 %v127
    %v167 = vunpack.c.h.b16 %v127
    %v168 = vunpack.c.l.b16 %v128
    %v169 = vunpack.c.h.b16 %v128
    %v170 = vunpack.c.l.b16 %v129
    %v171 = vunpack.c.h.b16 %v129
    %v172 = vunpack.c.l.b16 %v130
    %v173 = vunpack.c.h.b16 %v130
    %v174 = vunpack.c.l.b16 %v131
    %v175 = vunpack.c.h.b16 %v131
    %v176 = vunpack.c.l.b16 %v132
    %v177 = vunpack.c.h.b16 %v132
    %v178 = vunpack.c.l.b16 %v133
    %v179 = vunpack.c.h.b16 %v133
    %v180 = vunpack.c.l.b16 %v134
    %v181 = vunpack.c.h.b16 %v134
    %v182 = vunpack.c.l.b16 %v135
    %v183 = vunpack.c.h.b16 %v135
    %v184 = vpack.c.b16 %v162, %v160
    %v185 = vpack.c.b16 %v163, %v161
    %v186 = vpack.c.b16 %v166, %v164
    %v187 = vpack.c.b16 %v167, %v165
    %v188 = vpack.c.b16 %v170, %v168
    %v189 = vpack.c.b16 %v171, %v169
    %v190 = vpack.c.b16 %v174, %v172
    %v191 = vpack.c.b16 %v175, %v173
    %v192 = vpack.c.b16 %v178, %v176
    %v193 = vpack.c.b16 %v179, %v177
    %v194 = vpack.c.b16 %v182, %v180
    %v195 = vpack.c.b16 %v183, %v181
    %vm208 = vcmask 785408
    %v210 = vsel %vm208, %v123, 0
    %212 = vmatprep.subr.bf16.mxu0 %v185
    %213 = vmatpush1.bf16.msra.mxu0 %v184
    %214 = vmatprep.subr.bf16.mxu0 %v187
    %215 = vmatpush1.bf16.msra.mxu0 %v186
    %216 = vmatprep.subr.bf16.mxu0 %v189
    %217 = vmatpush1.bf16.msra.mxu0 %v188
    %218 = vmatprep.subr.bf16.mxu0 %v191
    %219 = vmatpush1.bf16.msra.mxu0 %v190
    %220 = vmatprep.subr.bf16.mxu0 %v193
    %221 = vmatpush1.bf16.msra.mxu0 %v192
    %222 = vmatprep.subr.bf16.mxu0 %v195
    %223 = vmatpush1.bf16.msra.mxu0 %v194
    %224 = vmatprep.subr.bf16.mxu0 0
    %225 = vmatpush1.bf16.msra.mxu0 0
    %226 = vmatprep.subr.bf16.mxu0 0
    %227 = vmatpush1.bf16.msra.mxu0 0
    %228 = vmatprep.subr.bf16.mxu0 0
    %229 = vmatpush1.bf16.msra.mxu0 0
    %230 = vmatprep.subr.bf16.mxu0 0
    %231 = vmatpush1.bf16.msra.mxu0 0
    %232 = vmatprep.subr.bf16.mxu0 0
    %233 = vmatpush1.bf16.msra.mxu0 0
    %234 = vmatprep.subr.bf16.mxu0 0
    %235 = vmatpush1.bf16.msra.mxu0 0
    %236 = vmatprep.subr.bf16.mxu0 0
    %237 = vmatpush1.bf16.msra.mxu0 0
    %238 = vmatprep.subr.bf16.mxu0 0
    %239 = vmatpush1.bf16.msra.mxu0 0
    %240 = vmatprep.subr.bf16.mxu0 0
    %241 = vmatpush1.bf16.msra.mxu0 0
    %242 = vmatprep.subr.bf16.mxu0 0
    %243 = vmatpush1.bf16.msra.mxu0 0
    %244 = vmatprep.mubr.bf16.mxu0 0
    %245 = vmatmul.mubr.bf16.gmra.mrb[0].mxu0 %v210
    %v246 = vpop.f32.mrb[0].mxu0
    %v247 = vadd.f32 %v141, %v246
    %v248 = vpop.f32.mrb[0].mxu0
    %v249 = vadd.f32 %v145, %v248
    %v250 = vpop.f32.mrb[0].mxu0
    %v251 = vpop.f32.mrb[0].mxu0
    %252 = vdwg.mxu0
    %v253 = vmax.f32 %v247, 0.0
    %v254 = vmax.f32 %v249, 0.0
    %255 = vst [vmem:[#allocation8] sm:$0xff] %v253
    %vm256 = vcmask 523264
    %257 = vst.msk [vmem:[#allocation8 + $0x8] sm:$0xff] %vm256, %v254
    // Predicated region
    $region34: #{tpu_custom_call.1} parent=1 // pred_check
      _
    $region35: #{tpu_custom_call.1} parent=1 // pred_check_branch
      %259 = sbr.rel (0) target = $region37
    $region36: #{tpu_custom_call.1} parent=1 // pred_region
      %s261 = ssub.s32 256, 256
      %262 = vsyncadd [#allocation4], %s261
      %s264 = sshll.u32 [#allocation8], 4
      %s265 = int_to_ptr.vmem [resolvable:$true] %s264
      %267 = dma.vmem_to_hbm [thread:$0]  %s265, 256, %s5, [#allocation4]
    $region37: #{tpu_custom_call.1} parent=1 // pred_fallthru
      _
    // Predicated region
    $region38: #{tpu_custom_call.1} parent=1 // pred_check
      _
    $region39: #{tpu_custom_call.1} parent=1 // pred_check_branch
      %269 = sbr.rel (0) target = $region41
    $region40: #{tpu_custom_call.1} parent=1 // pred_region
      %270 = dma.done [#allocation4], 256
    $region41: #{tpu_custom_call.1} parent=1 // pred_fallthru
      _
    %271 = vsyncpa [#allocation3], 1
    %272 = vsyncpa [#allocation6], 1
    %273 = vsyncpa [#allocation4], 1

</llo_original>
